<compile_context>
chip_gen: v7x
topology: tpu7x:2x2x1
jax: 0.10.0
libtpu: 0.0.40
codegen_flags: <defaults>
</compile_context>

<pallas_src>
import jax
import jax.numpy as jnp
from jax.experimental import pallas as pl
from jax.experimental.pallas import tpu as pltpu


def _fuse_kernel(w_ref, shift_ref, xh_ref, xl_ref, o_ref):
    # w_ref:     (C_out, C_high)  1x1 conv weight with BN scale folded in
    # shift_ref: (C_out, 1)       folded BN shift (+ conv bias)
    # xh_ref:    (C_high, TS)     high branch, spatial on the lane axis
    # xl_ref:    (C_out, TS)      low branch (residual)
    # o_ref:     (C_out, TS)
    y = jnp.dot(w_ref[...], xh_ref[...], preferred_element_type=jnp.float32)
    y = y + shift_ref[...]          # lane-broadcast per-channel shift
    y = jnp.maximum(y, 0.0)         # ReLU
    o_ref[...] = (y + xl_ref[...]).astype(o_ref.dtype)


def add_fuse_layer(xh, xl, conv_w, conv_b, bn_gamma, bn_beta,
                   bn_mean, bn_var, eps=1e-5, ts_target=2048):
    """xh: (N, C_high, H, W), xl: (N, C_out, H, W)  [NCHW, like PyTorch]."""
    N, C_high, H, W = xh.shape
    _, C_out, _, _ = xl.shape
    HW = H * W

    # Fold BatchNorm (eval mode, running stats) + conv bias:
    #   scale into the weight, everything else into a per-channel shift.
    scale = bn_gamma / jnp.sqrt(bn_var + eps)                   # (C_out,)
    shift = (conv_b - bn_mean) * scale + bn_beta                # (C_out,)
    w = conv_w.reshape(C_out, C_high) * scale[:, None]          # (C_out, C_high)

    # NCHW -> (N, C, H*W): pure reshape, no transpose, no extra HBM pass.
    xh3 = xh.reshape(N, C_high, HW)
    xl3 = xl.reshape(N, C_out, HW)

    # Pad spatial dim to a multiple of 128 lanes if needed (masked tail).
    HW_pad = ((HW + 127) // 128) * 128
    if HW_pad != HW:
        pad = HW_pad - HW
        xh3 = jnp.pad(xh3, ((0, 0), (0, 0), (0, pad)))
        xl3 = jnp.pad(xl3, ((0, 0), (0, 0), (0, pad)))

    # Largest 128-multiple spatial tile <= ts_target that divides HW_pad.
    ts = min(ts_target, HW_pad)
    while HW_pad % ts != 0:
        ts -= 128
    grid = (N, HW_pad // ts)

    # Advisory cost estimate for XLA scheduling around the custom call.
    flops = 2 * N * HW * C_high * C_out
    bytes_accessed = 4 * N * HW * (C_high + 2 * C_out)

    out3 = pl.pallas_call(
        _fuse_kernel,
        out_shape=jax.ShapeDtypeStruct((N, C_out, HW_pad), xl.dtype),
        grid_spec=pl.GridSpec(
            grid=grid,
            in_specs=[
                pl.BlockSpec((C_out, C_high), lambda n, s: (0, 0)),      # weight (resident)
                pl.BlockSpec((C_out, 1), lambda n, s: (0, 0)),           # shift  (resident)
                pl.BlockSpec((None, C_high, ts), lambda n, s: (n, 0, s)),  # xh tile
                pl.BlockSpec((None, C_out, ts), lambda n, s: (n, 0, s)),   # xl tile
            ],
            out_specs=pl.BlockSpec((None, C_out, ts), lambda n, s: (n, 0, s)),
        ),
        compiler_params=pltpu.CompilerParams(
            dimension_semantics=("parallel", "parallel")),
        cost_estimate=pl.CostEstimate(
            flops=flops, transcendentals=0, bytes_accessed=bytes_accessed),
    )(w, shift.reshape(C_out, 1), xh3, xl3)

    # Drop spatial padding (if any), back to NCHW.
    return out3[:, :, :HW].reshape(N, C_out, H, W)


def _reference(xh, xl, conv_w, conv_b, bn_gamma, bn_beta, bn_mean, bn_var,
               eps=1e-5):
    # Plain-JAX reference (eval-mode BN), NCHW.
    y = jax.lax.conv_general_dilated(
        xh, conv_w, window_strides=(1, 1), padding="VALID",
        dimension_numbers=("NCHW", "OIHW", "NCHW"))
    y = y + conv_b[None, :, None, None]
    y = (y - bn_mean[None, :, None, None]) / jnp.sqrt(
        bn_var[None, :, None, None] + eps)
    y = y * bn_gamma[None, :, None, None] + bn_beta[None, :, None, None]
    y = jnp.maximum(y, 0.0)
    return y + xl


if __name__ == "__main__":
    key = jax.random.PRNGKey(0)
    k_xh, k_xl, k_w, k_b, k_g, k_bt, k_m, k_v = jax.random.split(key, 8)

    # AddFuseLayer(in_high_channels=8, in_low_channels=4, out_channels=4, r=4)
    N, H, W = 2, 16, 16
    C_high, C_out = 8, 4

    xh = jax.random.normal(k_xh, (N, C_high, H, W), dtype=jnp.float32)
    xl = jax.random.normal(k_xl, (N, C_out, H, W), dtype=jnp.float32)

    # Deterministic synthetic parameters (Conv2d 1x1 + BatchNorm2d).
    conv_w = 0.1 * jax.random.normal(k_w, (C_out, C_high, 1, 1), jnp.float32)
    conv_b = 0.1 * jax.random.normal(k_b, (C_out,), jnp.float32)
    bn_gamma = 1.0 + 0.1 * jax.random.normal(k_g, (C_out,), jnp.float32)
    bn_beta = 0.1 * jax.random.normal(k_bt, (C_out,), jnp.float32)
    bn_mean = 0.1 * jax.random.normal(k_m, (C_out,), jnp.float32)
    bn_var = jnp.abs(jax.random.normal(k_v, (C_out,), jnp.float32)) + 0.5
    # TODO(synk): training-mode BatchNorm (batch statistics) not implemented;
    # eval-mode (running stats) semantics are used, matching inference.

    out = add_fuse_layer(xh, xl, conv_w, conv_b, bn_gamma, bn_beta,
                         bn_mean, bn_var)
    out = jax.block_until_ready(out)

    ref = _reference(xh, xl, conv_w, conv_b, bn_gamma, bn_beta,
                     bn_mean, bn_var)
    assert out.shape == (N, C_out, H, W)
    assert jnp.allclose(out, ref, atol=1e-5, rtol=1e-5)

    print("KERNEL_OK")
</pallas_src>

<mosaic_0001>
module attributes {stable_mosaic.version = 11 : i64} {
  func.func @_fuse_kernel(%arg0: i32, %arg1: i32, %arg2: memref<4x8xf32, #tpu.memory_space<vmem>>, %arg3: memref<4x1xf32, #tpu.memory_space<vmem>>, %arg4: memref<1x8x256xf32, #tpu.memory_space<vmem>>, %arg5: memref<1x4x256xf32, #tpu.memory_space<vmem>>, %arg6: memref<1x4x256xf32, #tpu.memory_space<vmem>>) attributes {dimension_semantics = [#tpu.dimension_semantics<parallel>, #tpu.dimension_semantics<parallel>], iteration_bounds = array<i64: 2, 1>, scalar_prefetch = 0 : i64, scratch_operands = 0 : i64, tpu.core_type = #tpu.core_type<tc>, window_params = [{pipeline_mode = #tpu.pipeline_mode<synchronous>, transform_indices = @transform_0, window_bounds = array<i64: 4, 8>}, {pipeline_mode = #tpu.pipeline_mode<synchronous>, transform_indices = @transform_1, window_bounds = array<i64: 4, 1>}, {transform_indices = @transform_2, window_bounds = array<i64: 1, 8, 256>}, {transform_indices = @transform_3, window_bounds = array<i64: 1, 4, 256>}, {transform_indices = @transform_4, window_bounds = array<i64: 1, 4, 256>}]} {
    %c0 = arith.constant 0 : index
    %c0_0 = arith.constant 0 : index
    %0 = vector.load %arg2[%c0, %c0_0] : memref<4x8xf32, #tpu.memory_space<vmem>>, vector<4x8xf32>
    %c0_1 = arith.constant 0 : index
    %c0_2 = arith.constant 0 : index
    %c0_3 = arith.constant 0 : index
    %1 = vector.load %arg4[%c0_1, %c0_2, %c0_3] : memref<1x8x256xf32, #tpu.memory_space<vmem>>, vector<1x8x256xf32>
    %2 = vector.shape_cast %1 : vector<1x8x256xf32> to vector<8x256xf32>
    %cst = arith.constant dense<0.000000e+00> : vector<4x256xf32>
    %3 = tpu.matmul %0, %2, %cst {dimension_numbers = #tpu.dot_dimension_numbers<[1], [0], [0], [1], [0, 0, 1, 1], [], []>} : vector<4x8xf32>, vector<8x256xf32>, vector<4x256xf32> -> vector<4x256xf32>
    %c0_4 = arith.constant 0 : index
    %c0_5 = arith.constant 0 : index
    %4 = vector.load %arg3[%c0_4, %c0_5] : memref<4x1xf32, #tpu.memory_space<vmem>>, vector<4x1xf32>
    %5 = vector.broadcast %4 : vector<4x1xf32> to vector<4x256xf32>
    %6 = arith.addf %3, %5 : vector<4x256xf32>
    %cst_6 = arith.constant 0.000000e+00 : f32
    %7 = vector.broadcast %cst_6 : f32 to vector<4x256xf32>
    %8 = arith.maximumf %6, %7 : vector<4x256xf32>
    %c0_7 = arith.constant 0 : index
    %c0_8 = arith.constant 0 : index
    %c0_9 = arith.constant 0 : index
    %9 = vector.load %arg5[%c0_7, %c0_8, %c0_9] : memref<1x4x256xf32, #tpu.memory_space<vmem>>, vector<1x4x256xf32>
    %10 = vector.shape_cast %9 : vector<1x4x256xf32> to vector<4x256xf32>
    %11 = arith.addf %8, %10 : vector<4x256xf32>
    %c0_10 = arith.constant 0 : index
    %c0_11 = arith.constant 0 : index
    %c0_12 = arith.constant 0 : index
    %12 = vector.load %arg6[%c0_10, %c0_11, %c0_12] : memref<1x4x256xf32, #tpu.memory_space<vmem>>, vector<1x4x256xf32>
    %13 = vector.shape_cast %12 : vector<1x4x256xf32> to vector<4x256xf32>
    %14 = vector.shape_cast %11 : vector<4x256xf32> to vector<1x4x256xf32>
    tpu.vector_store %arg6[%c0_10, %c0_11, %c0_12], %14 {strides = array<i32>} : memref<1x4x256xf32, #tpu.memory_space<vmem>>, vector<1x4x256xf32>,
    return
  }
  func.func @transform_0(%arg0: i32, %arg1: i32) -> (i32, i32) {
    %c0_i32 = arith.constant 0 : i32
    %c0_i32_0 = arith.constant 0 : i32
    %c0_i32_1 = arith.constant 0 : i32
    return %c0_i32, %c0_i32_0 : i32, i32
  }
  func.func @transform_1(%arg0: i32, %arg1: i32) -> (i32, i32) {
    %c0_i32 = arith.constant 0 : i32
    %c0_i32_0 = arith.constant 0 : i32
    %c0_i32_1 = arith.constant 0 : i32
    return %c0_i32, %c0_i32_0 : i32, i32
  }
  func.func @transform_2(%arg0: i32, %arg1: i32) -> (i32, i32, i32) {
    %c0_i32 = arith.constant 0 : i32
    %c0_i32_0 = arith.constant 0 : i32
    return %arg0, %c0_i32, %arg1 : i32, i32, i32
  }
  func.func @transform_3(%arg0: i32, %arg1: i32) -> (i32, i32, i32) {
    %c0_i32 = arith.constant 0 : i32
    %c0_i32_0 = arith.constant 0 : i32
    return %arg0, %c0_i32, %arg1 : i32, i32, i32
  }
  func.func @transform_4(%arg0: i32, %arg1: i32) -> (i32, i32, i32) {
    %c0_i32 = arith.constant 0 : i32
    %c0_i32_0 = arith.constant 0 : i32
    return %arg0, %c0_i32, %arg1 : i32, i32, i32
  }
}

</mosaic_0001>

<llo_original>
// kernel: tpu_custom_call.1
$region0: #{tpu_custom_call.1}
  #allocation0 [shape = 'u32[]', space=smem, size = 0x4, offset = 0x4, fixed_abs, tag = 'smem constant byte address 0x4 - core index']
  #allocation1 [shape = 'u32[144,128]{1,0:T(1,128)}', space=vmem, size = 0x12000, scoped, tag = 'internal scratch']
  %s0 = inlined_call_operand.hbm [shape: f32[4,8], index: 0, kind: input, shape index: {}]
  %s1 = inlined_call_operand.vmem [shape: f32[4,1], index: 1, kind: input, shape index: {}]
  %s2 = inlined_call_operand.hbm [shape: f32[2,8,256], index: 2, kind: input, shape index: {}]
  %s3 = inlined_call_operand.vmem [shape: f32[2,4,256], index: 3, kind: input, shape index: {}]
  %s4 = inlined_call_operand.hbm [shape: f32[2,4,256], index: 4, kind: output, shape index: {}]
  %s5 = sld [smem:[#allocation0]]
  $region57: #{tpu_custom_call.1} parent=0
    _
  %s7 = ssub.s32 1, %s5
  %s8 = scalar_select 0, %s7, %s5
  $region1: #{tpu_custom_call.1} parent=0
    #allocation2 [shape = 'u8[2048]{0}', space=vmem, size = 0x800, scoped, tag = 'input window, operand 0, single buffered']
    #allocation3 [shape = 's32[2]{0}', space=sflag, size = 0x8, scoped, tag = 'scoped memory for tpu_custom_call.1']
    #allocation4 [shape = 's32[2]{0}', space=sflag, size = 0x8, scoped, tag = 'scoped memory for tpu_custom_call.1']
    #allocation5 [shape = 'u8[16384]{0}', space=vmem, size = 0x4000, scoped, tag = 'input window, operand 2']
    #allocation6 [shape = 's32[2]{0}', space=sflag, size = 0x8, scoped, tag = 'scoped memory for tpu_custom_call.1']
    #allocation7 [shape = 'u8[8192]{0}', space=vmem, size = 0x2000, scoped, tag = 'output window, operand 0']
    %9 = vsyncpa [#allocation3], 0
    %10 = vsyncpa [#allocation6], 0
    %s11 = scalar_lea.sflag [#allocation6], 1
    %12 = vsyncpa %s11, 0
    %13 = vsyncpa [#allocation4], 0
    %s14 = scalar_lea.sflag [#allocation4], 1
    %15 = vsyncpa %s14, 0
    loop: start=0, step=1, limit=4
    $region2: #{tpu_custom_call.1} parent=1 // loop_pre_header
      _
    $region3: #{tpu_custom_call.1} parent=1 // loop_header
      %s17 = sphi 0, %s21
      %p18 = scmp.ge.s32.totalorder %s17, 4
      %s24 = sphi 0, %s36
      %s25 = sphi 0, %s32
      %s26 = sphi 0, %s24
      %s27 = sphi 0, %s25
      %s28 = sphi 0, %s26
      %s29 = sphi 0, %s27
      %s37 = sphi 0, %s37
      %s39 = sphi 0, %s37
      %s40 = sphi 0, %s39
      %s54 = sphi 0, %s40
      %s58 = sphi 0, %s58
      %s60 = sphi 0, %s58
      %s61 = sphi 0, %s60
      %s75 = sphi 0, %s61
      %s83 = sphi 0, %s85
      %s86 = sphi 0, %s83
      %s87 = sphi 0, %s86
      %s103 = sphi 0, %s87
      %s111 = sphi 0, %s113
      %s114 = sphi 0, %s111
      %s115 = sphi 0, %s114
      %s131 = sphi 0, %s115
      %s139 = sphi 0, %s141
      %s142 = sphi 0, %s139
      %s143 = sphi 0, %s142
      %s159 = sphi 0, %s143
    $region4: #{tpu_custom_call.1} parent=1 // loop_header_branch
      %20 = sbr.rel (%p18) target = $region8
    $region5: #{tpu_custom_call.1} parent=1 // loop_body
      %s22 = ssub.s32 %s17, 1
      %s23 = ssub.s32 %s17, 2
      %s30 = sadd.s32 1, %s25
      %p31 = scmp.ge.s32.totalorder %s30, 1
      %s32 = scalar_select %p31, 0, %s30
      %s33 = sadd.s32 1, %s24
      %s34 = scalar_select %p31, %s33, %s24
      %p35 = scmp.ge.s32.totalorder %s34, 2
      %s36 = scalar_select %p35, 0, %s34
      %s38 = sadd.s32 %s37, 1
      %p41 = scmp.eq.s32.totalorder %s17, 1
      %p42 = scmp.ne.s32.totalorder %s37, %s39
      %p43 = scmp.eq.s32.totalorder %s17, 0
      %p44 = por %p42, %p43
      %p45 = scmp.ne.s32.totalorder %s37, %s39
      %p46 = scmp.eq.s32.totalorder %s22, 1
      %p47 = por %p45, %p46
      %p48 = scmp.ne.s32.totalorder %s39, %s40
      %p49 = scmp.eq.s32.totalorder %s22, 0
      %p50 = por %p48, %p49
      %p51 = scmp.ne.s32.totalorder %s39, %s40
      %p52 = scmp.eq.s32.totalorder %s23, 1
      %p53 = por %p51, %p52
      %p55 = scmp.ne.s32.totalorder %s40, %s54
      %p56 = scmp.eq.s32.totalorder %s23, 0
      %p57 = por %p55, %p56
      %s59 = sadd.s32 %s58, 1
      %p62 = scmp.eq.s32.totalorder %s17, 1
      %p63 = scmp.ne.s32.totalorder %s58, %s60
      %p64 = scmp.eq.s32.totalorder %s17, 0
      %p65 = por %p63, %p64
      %p66 = scmp.ne.s32.totalorder %s58, %s60
      %p67 = scmp.eq.s32.totalorder %s22, 1
      %p68 = por %p66, %p67
      %p69 = scmp.ne.s32.totalorder %s60, %s61
      %p70 = scmp.eq.s32.totalorder %s22, 0
      %p71 = por %p69, %p70
      %p72 = scmp.ne.s32.totalorder %s60, %s61
      %p73 = scmp.eq.s32.totalorder %s23, 1
      %p74 = por %p72, %p73
      %p76 = scmp.ne.s32.totalorder %s61, %s75
      %p77 = scmp.eq.s32.totalorder %s23, 0
      %p78 = por %p76, %p77
      %s79 = ssub.s32 %s24, %s36
      %s80 = ssub.s32 %s25, %s32
      %s81 = sor.u32 %s79, %s80
      %p82 = scmp.eq.s32.totalorder %s81, 0
      %s84 = sadd.s32 %s83, 1
      %s85 = scalar_select %p82, %s83, %s84
      %p88 = pneg %p82
      %p89 = scmp.eq.s32.totalorder %s17, 1
      %p90 = por %p88, %p89
      %p91 = scmp.ne.s32.totalorder %s83, %s86
      %p92 = scmp.eq.s32.totalorder %s17, 0
      %p93 = por %p91, %p92
      %p94 = scmp.ne.s32.totalorder %s83, %s86
      %p95 = scmp.eq.s32.totalorder %s22, 1
      %p96 = por %p94, %p95
      %p97 = scmp.ne.s32.totalorder %s86, %s87
      %p98 = scmp.eq.s32.totalorder %s22, 0
      %p99 = por %p97, %p98
      %p100 = scmp.ne.s32.totalorder %s86, %s87
      %p101 = scmp.eq.s32.totalorder %s23, 1
      %p102 = por %p100, %p101
      %p104 = scmp.ne.s32.totalorder %s87, %s103
      %p105 = scmp.eq.s32.totalorder %s23, 0
      %p106 = por %p104, %p105
      %s107 = ssub.s32 %s24, %s36
      %s108 = ssub.s32 %s25, %s32
      %s109 = sor.u32 %s107, %s108
      %p110 = scmp.eq.s32.totalorder %s109, 0
      %s112 = sadd.s32 %s111, 1
      %s113 = scalar_select %p110, %s111, %s112
      %p116 = pneg %p110
      %p117 = scmp.eq.s32.totalorder %s17, 1
      %p118 = por %p116, %p117
      %p119 = scmp.ne.s32.totalorder %s111, %s114
      %p120 = scmp.eq.s32.totalorder %s17, 0
      %p121 = por %p119, %p120
      %p122 = scmp.ne.s32.totalorder %s111, %s114
      %p123 = scmp.eq.s32.totalorder %s22, 1
      %p124 = por %p122, %p123
      %p125 = scmp.ne.s32.totalorder %s114, %s115
      %p126 = scmp.eq.s32.totalorder %s22, 0
      %p127 = por %p125, %p126
      %p128 = scmp.ne.s32.totalorder %s114, %s115
      %p129 = scmp.eq.s32.totalorder %s23, 1
      %p130 = por %p128, %p129
      %p132 = scmp.ne.s32.totalorder %s115, %s131
      %p133 = scmp.eq.s32.totalorder %s23, 0
      %p134 = por %p132, %p133
      %s135 = ssub.s32 %s24, %s36
      %s136 = ssub.s32 %s25, %s32
      %s137 = sor.u32 %s135, %s136
      %p138 = scmp.eq.s32.totalorder %s137, 0
      %s140 = sadd.s32 %s139, 1
      %s141 = scalar_select %p138, %s139, %s140
      %p144 = pneg %p138
      %p145 = scmp.eq.s32.totalorder %s17, 1
      %p146 = por %p144, %p145
      %p147 = scmp.ne.s32.totalorder %s139, %s142
      %p148 = scmp.eq.s32.totalorder %s17, 0
      %p149 = por %p147, %p148
      %p150 = scmp.ne.s32.totalorder %s139, %s142
      %p151 = scmp.eq.s32.totalorder %s22, 1
      %p152 = por %p150, %p151
      %p153 = scmp.ne.s32.totalorder %s142, %s143
      %p154 = scmp.eq.s32.totalorder %s22, 0
      %p155 = por %p153, %p154
      %p156 = scmp.ne.s32.totalorder %s142, %s143
      %p157 = scmp.eq.s32.totalorder %s23, 1
      %p158 = por %p156, %p157
      %p160 = scmp.ne.s32.totalorder %s143, %s159
      %p161 = scmp.eq.s32.totalorder %s23, 0
      %p162 = por %p160, %p161
      %p163 = scmp.le.s32.totalorder 1, %s17
      %p164 = scmp.lt.s32.totalorder %s17, 3
      %p165 = pnand %p163, %p164
      %p166 = pneg %p165
      // Predicated region
      $region9: #{tpu_custom_call.1} parent=5 // pred_check
        _
      $region10: #{tpu_custom_call.1} parent=5 // pred_check_branch
        %168 = sbr.rel (%p165) target = $region12
      $region11: #{tpu_custom_call.1} parent=5 // pred_region
        %s169 = ssub.s32 %s17, 1
        // Predicated region
        $region13: #{tpu_custom_call.1} parent=11 // pred_check
          %p170 = pneg %p50
        $region14: #{tpu_custom_call.1} parent=11 // pred_check_branch
          %172 = sbr.rel (%p170) target = $region16
        $region15: #{tpu_custom_call.1} parent=11 // pred_region
          %s174 = ssub.s32 64, 64
          %175 = vsyncadd [#allocation3], %s174
          %s177 = sshll.u32 [#allocation2], 4
          %s178 = int_to_ptr.vmem [resolvable:$true] %s177
          %180 = dma.hbm_to_vmem [thread:$0]  %s0, 64, %s178, [#allocation3]
        $region16: #{tpu_custom_call.1} parent=11 // pred_fallthru
          _
        // Predicated region
        $region17: #{tpu_custom_call.1} parent=11 // pred_check
          %p181 = pneg %p71
        $region18: #{tpu_custom_call.1} parent=11 // pred_check_branch
          %183 = sbr.rel (%p181) target = $region20
        $region19: #{tpu_custom_call.1} parent=11 // pred_region
          _
        $region20: #{tpu_custom_call.1} parent=11 // pred_fallthru
          _
      $region12: #{tpu_custom_call.1} parent=5 // pred_fallthru
        _
      %p184 = scmp.lt.s32.totalorder %s17, 2
      // Predicated region
      $region21: #{tpu_custom_call.1} parent=5 // pred_check
        %p185 = pneg %p184
      $region22: #{tpu_custom_call.1} parent=5 // pred_check_branch
        %187 = sbr.rel (%p185) target = $region24
      $region23: #{tpu_custom_call.1} parent=5 // pred_region
        // Predicated region
        $region25: #{tpu_custom_call.1} parent=23 // pred_check
          %p188 = pneg %p93
        $region26: #{tpu_custom_call.1} parent=23 // pred_check_branch
          %190 = sbr.rel (%p188) target = $region28
        $region27: #{tpu_custom_call.1} parent=23 // pred_region
          %s191 = sand.u32 %s83, 1
          %s192 = scalar_lea.sflag [#allocation6], %s191
          %s193 = sand.u32 %s83, 1
          %s194 = smul.addr %s193, 16
          %s195 = scalar_lea.vmem [#allocation5], %s194
          %s196 = smul.u32 2, %s25
          %s198 = ssub.s32 256, 256
          %199 = vsyncadd %s192, %s198
          %s200 = smul.addr %s24, 2
          %s201 = sadd.s32 %s196, %s200
          %s202 = smul.addr %s201, 128
          %s203 = scalar_lea.hbm %s2, %s202
          %s205 = sshll.u32 %s195, 4
          %s206 = int_to_ptr.vmem [resolvable:$true] %s205
          %208 = dma.hbm_to_vmem [thread:$0]  %s203, 256, %s206, %s192
        $region28: #{tpu_custom_call.1} parent=23 // pred_fallthru
          _
        // Predicated region
        $region29: #{tpu_custom_call.1} parent=23 // pred_check
          %p209 = pneg %p121
        $region30: #{tpu_custom_call.1} parent=23 // pred_check_branch
          %211 = sbr.rel (%p209) target = $region32
        $region31: #{tpu_custom_call.1} parent=23 // pred_region
          %s212 = smul.u32 2, %s25
          %p213 = scmp.lt.s32.totalorder %s24, 1
          %s214 = scalar_select %p213, %s24, 1
          %p215 = scmp.lt.s32.totalorder %s212, 1
          %s216 = scalar_select %p215, %s212, 1
          %s217 = smul.addr %s214, 2
          %s218 = sadd.s32 %s216, %s217
          %s219 = smul.addr %s218, 4
          %s220 = scalar_lea.vmem %s3, %s219
          %s221 = smul.u32 2, %s25
        $region32: #{tpu_custom_call.1} parent=23 // pred_fallthru
          _
      $region24: #{tpu_custom_call.1} parent=5 // pred_fallthru
        _
      %p222 = scmp.le.s32.totalorder 1, %s17
      %p223 = scmp.lt.s32.totalorder %s17, 3
      %p224 = pnand %p222, %p223
      %p225 = pneg %p224
      // Predicated region
      $region33: #{tpu_custom_call.1} parent=5 // pred_check
        _
      $region34: #{tpu_custom_call.1} parent=5 // pred_check_branch
        %227 = sbr.rel (%p224) target = $region36
      $region35: #{tpu_custom_call.1} parent=5 // pred_region
        %s228 = ssub.s32 %s17, 1
        // Predicated region
        $region37: #{tpu_custom_call.1} parent=35 // pred_check
          %p229 = pneg %p50
        $region38: #{tpu_custom_call.1} parent=35 // pred_check_branch
          %231 = sbr.rel (%p229) target = $region40
        $region39: #{tpu_custom_call.1} parent=35 // pred_region
          %232 = dma.done [#allocation3], 64
        $region40: #{tpu_custom_call.1} parent=35 // pred_fallthru
          _
        %s233 = sand.u32 %s86, 1
        %s234 = scalar_lea.sflag [#allocation6], %s233
        %s235 = sand.u32 %s86, 1
        %s236 = smul.addr %s235, 16
        %s237 = scalar_lea.vmem [#allocation5], %s236
        // Predicated region
        $region41: #{tpu_custom_call.1} parent=35 // pred_check
          %p238 = pneg %p99
        $region42: #{tpu_custom_call.1} parent=35 // pred_check_branch
          %240 = sbr.rel (%p238) target = $region44
        $region43: #{tpu_custom_call.1} parent=35 // pred_region
          %241 = dma.done %s234, 256
        $region44: #{tpu_custom_call.1} parent=35 // pred_fallthru
          _
        %p242 = pneg %p50
        %p243 = pneg %p47
        %p244 = pneg %p71
        %p245 = pneg %p68
        %s246 = sand.u32 %s86, 1
        %s247 = scalar_lea.sflag [#allocation6], %s246
        %s248 = sand.u32 %s86, 1
        %s249 = smul.addr %s248, 16
        %s250 = scalar_lea.vmem [#allocation5], %s249
        %p251 = pneg %p99
        %p252 = pneg %p96
        %s253 = smul.u32 2, %s27
        %p254 = scmp.lt.s32.totalorder %s26, 1
        %s255 = scalar_select %p254, %s26, 1
        %p256 = scmp.lt.s32.totalorder %s253, 1
        %s257 = scalar_select %p256, %s253, 1
        %s258 = smul.addr %s255, 2
        %s259 = sadd.s32 %s257, %s258
        %s260 = smul.addr %s259, 4
        %s261 = scalar_lea.vmem %s3, %s260
        %p262 = pneg %p127
        %p263 = pneg %p124
        %p264 = pneg %p155
        %p265 = pneg %p152
        %s266 = sand.u32 %s142, 1
        %s267 = scalar_lea.sflag [#allocation4], %s266
        %s268 = sand.u32 %s142, 1
        %s269 = smul.addr %s268, 8
        %s270 = scalar_lea.vmem [#allocation7], %s269
        %s271 = smul.u32 2, %s27
        %s272 = smul.u32 2, %s27
        %p273 = scmp.lt.s32.totalorder %s26, 1
        %s274 = scalar_select %p273, %s26, 1
        %p275 = scmp.lt.s32.totalorder %s272, 1
        %s276 = scalar_select %p275, %s272, 1
        %s277 = smul.addr %s274, 2
        %s278 = sadd.s32 %s276, %s277
        %s279 = smul.addr %s278, 4
        %s280 = scalar_lea.vmem %s3, %s279
        %s281 = smul.u32 2, %s27
        %s282 = smul.u32 2, %s27
        %v283 = vld [vmem:[#allocation2] sm:$0xf]
        %v284 = vld [vmem:[%s237] sm:$0xff]
        %v285 = vld [vmem:[%s237 + $0x8] sm:$0xff]
        %v286 = vld [vmem:[%s1] sm:$0xf]
        %288 = vset.pattern.permute.xlu0 0
        %289 = vperm.xlu0 %288, %v286
        %v290 = vpop.permute.xlu0 %289
        %vm292 = vcmask 64512
        %v294 = vsel %vm292, %v283, 0
        %296 = vmatprep.subr.mxu0 %v285
        %297 = vmatpush1.msra.mxu0 %v284
        %298 = vmatprep.subr.mxu0 0.0
        %299 = vmatpush1.msra.mxu0 0.0
        %300 = vmatprep.subr.mxu0 0.0
        %301 = vmatpush1.msra.mxu0 0.0
        %302 = vmatprep.subr.mxu0 0.0
        %303 = vmatpush1.msra.mxu0 0.0
        %304 = vmatprep.subr.mxu0 0.0
        %305 = vmatpush1.msra.mxu0 0.0
        %306 = vmatprep.subr.mxu0 0.0
        %307 = vmatpush1.msra.mxu0 0.0
        %308 = vmatprep.subr.mxu0 0.0
        %309 = vmatpush1.msra.mxu0 0.0
        %310 = vmatprep.subr.mxu0 0.0
        %311 = vmatpush1.msra.mxu0 0.0
        %312 = vmatprep.subr.mxu0 0.0
        %313 = vmatpush1.msra.mxu0 0.0
        %314 = vmatprep.subr.mxu0 0.0
        %315 = vmatpush1.msra.mxu0 0.0
        %316 = vmatprep.subr.mxu0 0.0
        %317 = vmatpush1.msra.mxu0 0.0
        %318 = vmatprep.subr.mxu0 0.0
        %319 = vmatpush1.msra.mxu0 0.0
        %320 = vmatprep.subr.mxu0 0.0
        %321 = vmatpush1.msra.mxu0 0.0
        %322 = vmatprep.subr.mxu0 0.0
        %323 = vmatpush1.msra.mxu0 0.0
        %324 = vmatprep.subr.mxu0 0.0
        %325 = vmatpush1.msra.mxu0 0.0
        %326 = vmatprep.subr.mxu0 0.0
        %327 = vmatpush1.msra.mxu0 0.0
        %328 = vmatprep.subr.mxu0 0.0
        %329 = vmatpush1.msra.mxu0 0.0
        %330 = vmatprep.subr.mxu0 0.0
        %331 = vmatpush1.msra.mxu0 0.0
        %332 = vmatprep.subr.mxu0 0.0
        %333 = vmatpush1.msra.mxu0 0.0
        %334 = vmatprep.subr.mxu0 0.0
        %335 = vmatpush1.msra.mxu0 0.0
        %336 = vmatprep.subr.mxu0 0.0
        %337 = vmatpush1.msra.mxu0 0.0
        %338 = vmatprep.subr.mxu0 0.0
        %339 = vmatpush1.msra.mxu0 0.0
        %340 = vmatprep.subr.mxu0 0.0
        %341 = vmatpush1.msra.mxu0 0.0
        %342 = vmatprep.subr.mxu0 0.0
        %343 = vmatpush1.msra.mxu0 0.0
        %344 = vmatprep.subr.mxu0 0.0
        %345 = vmatpush1.msra.mxu0 0.0
        %346 = vmatprep.subr.mxu0 0.0
        %347 = vmatpush1.msra.mxu0 0.0
        %348 = vmatprep.subr.mxu0 0.0
        %349 = vmatpush1.msra.mxu0 0.0
        %350 = vmatprep.subr.mxu0 0.0
        %351 = vmatpush1.msra.mxu0 0.0
        %352 = vmatprep.subr.mxu0 0.0
        %353 = vmatpush1.msra.mxu0 0.0
        %354 = vmatprep.subr.mxu0 0.0
        %355 = vmatpush1.msra.mxu0 0.0
        %356 = vmatprep.subr.mxu0 0.0
        %357 = vmatpush1.msra.mxu0 0.0
        %358 = vmatprep.subr.mxu0 0.0
        %359 = vmatpush1.msra.mxu0 0.0
        %360 = vmatprep.mubr.f32.mxu0 0.0
        %361 = vmatmul.mubr.f32.gmra.mrb[0].mxu0 %v294
        %v362 = vpop.f32.mrb[0].mxu0
        %v363 = vadd.f32 %v290, %v362
        %v364 = vpop.f32.mrb[0].mxu0
        %v365 = vadd.f32 %v290, %v364
        %366 = vdwg.mxu0
        %v367 = vmax.f32 %v363, 0.0
        %v368 = vmax.f32 %v365, 0.0
        %v369 = vld [vmem:[%s280] sm:$0xff]
        %v371 = vcombine.high %v369, %v369
        %v373 = vadd.f32 %v367, %v369
        %v374 = vadd.f32 %v368, %v371
        %v377 = vcombine.low %v373, %v374
        %379 = vst [vmem:[%s270] sm:$0xff] %v377
        %s380 = sand.u32 %s142, 1
        %s381 = scalar_lea.sflag [#allocation4], %s380
        %s382 = sand.u32 %s142, 1
        %s383 = smul.addr %s382, 8
        %s384 = scalar_lea.vmem [#allocation7], %s383
        // Predicated region
        $region45: #{tpu_custom_call.1} parent=35 // pred_check
          %p385 = pneg %p152
        $region46: #{tpu_custom_call.1} parent=35 // pred_check_branch
          %387 = sbr.rel (%p385) target = $region48
        $region47: #{tpu_custom_call.1} parent=35 // pred_region
          %s388 = smul.u32 2, %s27
          %s390 = ssub.s32 128, 128
          %391 = vsyncadd %s381, %s390
          %s392 = smul.addr %s26, 2
          %s393 = sadd.s32 %s388, %s392
          %s394 = smul.addr %s393, 64
          %s395 = scalar_lea.hbm %s4, %s394
          %s397 = sshll.u32 %s384, 4
          %s398 = int_to_ptr.vmem [resolvable:$true] %s397
          %400 = dma.vmem_to_hbm [thread:$0]  %s398, 128, %s395, %s381
        $region48: #{tpu_custom_call.1} parent=35 // pred_fallthru
          _
      $region36: #{tpu_custom_call.1} parent=5 // pred_fallthru
        _
      %p401 = scmp.le.s32.totalorder 2, %s17
      // Predicated region
      $region49: #{tpu_custom_call.1} parent=5 // pred_check
        %p402 = pneg %p401
      $region50: #{tpu_custom_call.1} parent=5 // pred_check_branch
        %404 = sbr.rel (%p402) target = $region52
      $region51: #{tpu_custom_call.1} parent=5 // pred_region
        %s405 = ssub.s32 %s17, 2
        // Predicated region
        $region53: #{tpu_custom_call.1} parent=51 // pred_check
          %p406 = pneg %p158
        $region54: #{tpu_custom_call.1} parent=51 // pred_check_branch
          %408 = sbr.rel (%p406) target = $region56
        $region55: #{tpu_custom_call.1} parent=51 // pred_region
          %s409 = sand.u32 %s143, 1
          %s410 = scalar_lea.sflag [#allocation4], %s409
          %s411 = sand.u32 %s143, 1
          %s412 = smul.addr %s411, 8
          %s413 = scalar_lea.vmem [#allocation7], %s412
          %414 = dma.done %s410, 128
        $region56: #{tpu_custom_call.1} parent=51 // pred_fallthru
          _
      $region52: #{tpu_custom_call.1} parent=5 // pred_fallthru
        _
    $region6: #{tpu_custom_call.1} parent=1 // loop_footer
      %s21 = sadd.s32 1, %s17
    $region7: #{tpu_custom_call.1} parent=1 // loop_footer_branch
      %16 = sbr.rel target = $region3
    $region8: #{tpu_custom_call.1} parent=1 // loop_exit
      _
    %415 = vsyncpa [#allocation3], 1
    %s416 = scalar_lea.sflag [#allocation3], 1
    %417 = vsyncpa %s416, 1
    %418 = vsyncpa [#allocation6], 1
    %s419 = scalar_lea.sflag [#allocation6], 1
    %420 = vsyncpa %s419, 1
    %421 = vsyncpa [#allocation4], 1
    %s422 = scalar_lea.sflag [#allocation4], 1
    %423 = vsyncpa %s422, 1

</llo_original>
